<compile_context>
chip_gen: v7x
topology: tpu7x:2x2x1
jax: 0.10.0
libtpu: 0.0.40
codegen_flags: <defaults>
</compile_context>

<pallas_src>
from functools import partial

import jax
import jax.numpy as jnp
from jax.experimental import pallas as pl
from jax.experimental.pallas import tpu as pltpu


def _r8(n):
    return -(-n // 8) * 8


def _gru_kernel(x_ref, h0_ref, p_ref, state_ref, y_ref, gi_ref):
    TB, D = x_ref.shape
    B, H = h0_ref.shape
    O = y_ref.shape[1]
    T = TB // B

    # ---- unpack the single packed parameter array (static, 8-aligned rows) --
    o = 0
    w_ih_t = p_ref[o:o + D, :]                                 # (D, 3H) f32
    o += _r8(D)
    whh = p_ref[o:o + H, :].astype(jnp.bfloat16)               # (H, 3H) fused r|z|n RHS, bf16
    o += _r8(H)
    bi = p_ref[o:o + 1, :]                                     # (1, 3H)  b_ih + [b_hr, b_hz, 0]
    o += 8
    bhn = p_ref[o:o + 1, :H]                                   # (1, H)   n-gate hidden bias
    o += 8
    w_out_t = p_ref[o:o + H, :O]                               # (H, O)
    o += _r8(H)
    b_out = p_ref[o:o + 1, :O]                                 # (1, O)

    # ---- hoisted input projection: one MXU call for all T steps -------------
    gi_ref[...] = jnp.dot(x_ref[...], w_ih_t,
                          preferred_element_type=jnp.float32) + bi

    # hoist the broadcast out of the unrolled loop (JAX won't CSE it)
    bhn_b = jnp.broadcast_to(bhn, (B, H))

    def _sigmoid(v):
        # one EUP push (tanh) instead of exp + divide; extra mul/add -> idle VPU slot
        return 0.5 * jnp.tanh(0.5 * v) + 0.5

    # ---- recurrence, fully unrolled (T is static & tiny) --------------------
    h = h0_ref[...]                                            # (B, H) f32, vreg-resident carry
    h_t0 = h
    for t in range(T):
        gi_t = gi_ref[t * B:(t + 1) * B, :]                    # (B, 3H) vld from scratch
        gh = jnp.dot(h.astype(jnp.bfloat16), whh,              # ONE MXU push per step
                     preferred_element_type=jnp.float32)       # (B, 3H) f32 accum
        rz = _sigmoid(gi_t[:, :2 * H] + gh[:, :2 * H])         # r and z in one EUP push
        r = rz[:, :H]
        z = rz[:, H:]
        n = jnp.tanh(gi_t[:, 2 * H:] + r * (gh[:, 2 * H:] + bhn_b))
        h = n + z * (h - n)                                    # == (1-z)*n + z*h
        if t == 0:
            h_t0 = h                                           # GRU output at timestep 0

    # ---- outputs -------------------------------------------------------------
    state_ref[...] = h
    y_ref[...] = jnp.dot(h_t0, w_out_t,
                         preferred_element_type=jnp.float32) + b_out


def pack_params(params):
    """Pack all transposed / bias-folded parameters into ONE f32 array.

    Layout (rows, all sections padded to multiples of 8 rows, 3H columns):
      [ w_ih^T | w_hh^T (fused r|z|n) | b_i (folded) | b_hn | w_out^T | b_out ]
    Done once, outside the per-call path (perf review item).
    """
    w_ih, w_hh, b_ih, b_hh, w_out, b_out = params
    H = w_hh.shape[1]
    D = w_ih.shape[1]
    O = w_out.shape[0]
    C = 3 * H
    assert D <= C and O <= C

    def pad(a):
        a = jnp.asarray(a, jnp.float32)
        return jnp.pad(a, ((0, _r8(a.shape[0]) - a.shape[0]), (0, C - a.shape[1])))

    wih_t = w_ih.T                                              # (D, 3H)
    whh_t = w_hh.T                                              # (H, 3H) fused per-gate RHS
    # Fold b_ih and the r/z parts of b_hh into the pre-loop input projection.
    bi = (b_ih + jnp.concatenate(
        [b_hh[:H], b_hh[H:2 * H], jnp.zeros((H,), b_hh.dtype)])).reshape(1, C)
    bhn = b_hh[2 * H:].reshape(1, H)                            # n-gate hidden bias only
    wout_t = w_out.T                                            # (H, O)
    bout = b_out.reshape(1, O)

    return jnp.concatenate(
        [pad(wih_t), pad(whh_t), pad(bi), pad(bhn), pad(wout_t), pad(bout)], axis=0)


def model_controller_forward(state, x, packed_params, *, outputs_count):
    """state: (1, B, H) f32, x: (T, B, D) f32 -> (state_new (1,B,H), y (B,O))."""
    T, B, D = x.shape
    H = state.shape[-1]
    O = outputs_count

    h0 = state[0]                    # (B, H)
    x_flat = x.reshape(T * B, D)     # flatten in the wrapper (free under jit)

    vmem = pl.BlockSpec(memory_space=pltpu.MemorySpace.VMEM)
    state_new, y = pl.pallas_call(
        _gru_kernel,
        out_shape=(jax.ShapeDtypeStruct((B, H), jnp.float32),
                   jax.ShapeDtypeStruct((B, O), jnp.float32)),
        in_specs=[vmem, vmem, vmem],
        out_specs=(vmem, vmem),
        scratch_shapes=[pltpu.VMEM((T * B, 3 * H), jnp.float32)],
    )(x_flat, h0, packed_params)

    return state_new.reshape(1, B, H), y


def _reference_forward(state, x, params, recur_dtype=jnp.float32):
    """Pure-JAX reference mirroring torch.nn.GRU + Linear on y[0].

    recur_dtype=bfloat16 reproduces the kernel's bf16 MXU operands for the
    recurrent h @ W_hh^T matmul (f32 accumulation)."""
    w_ih, w_hh, b_ih, b_hh, w_out, b_out = params
    H = w_hh.shape[1]
    with jax.default_matmul_precision("highest"):
        whh_t = w_hh.T.astype(recur_dtype)
        h = state[0]
        y0 = None
        for t in range(x.shape[0]):
            gi = jnp.dot(x[t], w_ih.T, preferred_element_type=jnp.float32) + b_ih
            gh = jnp.dot(h.astype(recur_dtype), whh_t,
                         preferred_element_type=jnp.float32) + b_hh
            r = jax.nn.sigmoid(gi[:, :H] + gh[:, :H])
            z = jax.nn.sigmoid(gi[:, H:2 * H] + gh[:, H:2 * H])
            n = jnp.tanh(gi[:, 2 * H:] + r * gh[:, 2 * H:])
            h = (1.0 - z) * n + z * h
            if t == 0:
                y0 = h
        y = jnp.dot(y0, w_out.T, preferred_element_type=jnp.float32) + b_out
    return h[None], y


def init_params(key, inputs_count, outputs_count, hidden=32):
    D = inputs_count + outputs_count
    H = hidden
    O = outputs_count
    k = jax.random.split(key, 5)
    bound = 1.0 / jnp.sqrt(H)
    w_ih = jax.random.uniform(k[0], (3 * H, D), jnp.float32, -bound, bound)
    w_hh = jax.random.uniform(k[1], (3 * H, H), jnp.float32, -bound, bound)
    b_ih = jax.random.uniform(k[2], (3 * H,), jnp.float32, -bound, bound)
    b_hh = jax.random.uniform(k[3], (3 * H,), jnp.float32, -bound, bound)
    # xavier_uniform for the Linear weight, zeros for the bias.
    xav = jnp.sqrt(6.0 / (H + O))
    w_out = jax.random.uniform(k[4], (O, H), jnp.float32, -xav, xav)
    b_out = jnp.zeros((O,), jnp.float32)
    return (w_ih, w_hh, b_ih, b_hh, w_out, b_out)


if __name__ == "__main__":
    inputs_count, outputs_count = 4, 4
    T, B, H = 8, 2, 32
    D = inputs_count + outputs_count

    key = jax.random.PRNGKey(0)
    kp, kx, ks = jax.random.split(key, 3)
    params = init_params(kp, inputs_count, outputs_count, H)
    x = jax.random.normal(kx, (T, B, D), jnp.float32)
    state = jax.random.normal(ks, (1, B, H), jnp.float32)

    # Pack/transpose/fold parameters ONCE, outside the per-call path; jit the forward.
    packed = pack_params(params)
    fwd = jax.jit(partial(model_controller_forward, outputs_count=outputs_count))

    state_new, y = fwd(state, x, packed)
    jax.block_until_ready((state_new, y))

    # Tight check vs a reference that matches the kernel's bf16 recurrent matmul.
    ref_state_bf, ref_y_bf = _reference_forward(state, x, params, jnp.bfloat16)
    assert jnp.allclose(state_new, ref_state_bf, atol=5e-3), "state mismatch (bf16 ref)"
    assert jnp.allclose(y, ref_y_bf, atol=5e-3), "output mismatch (bf16 ref)"

    # Loose sanity check vs the pure-f32 PyTorch-equivalent reference
    # (bf16 MXU operands in the recurrence -> relaxed tolerance, per review).
    ref_state, ref_y = _reference_forward(state, x, params, jnp.float32)
    assert jnp.allclose(state_new, ref_state, atol=5e-2), "state mismatch (f32 ref)"
    assert jnp.allclose(y, ref_y, atol=5e-2), "output mismatch (f32 ref)"

    print("KERNEL_OK")
</pallas_src>

<mosaic_0001>
module attributes {stable_mosaic.version = 11 : i64} {
  func.func @_gru_kernel(%arg0: memref<16x8xf32, #tpu.memory_space<vmem>>, %arg1: memref<2x32xf32, #tpu.memory_space<vmem>>, %arg2: memref<96x96xf32, #tpu.memory_space<vmem>>, %arg3: memref<2x32xf32, #tpu.memory_space<vmem>>, %arg4: memref<2x4xf32, #tpu.memory_space<vmem>>, %arg5: memref<16x96xf32, #tpu.memory_space<vmem>>) attributes {dimension_semantics = [], scalar_prefetch = 0 : i64, scratch_operands = 1 : i64, tpu.core_type = #tpu.core_type<tc>} {
    %c0 = arith.constant 0 : index
    %c0_0 = arith.constant 0 : index
    %0 = vector.load %arg2[%c0, %c0_0] : memref<96x96xf32, #tpu.memory_space<vmem>>, vector<8x96xf32>
    %c8 = arith.constant 8 : index
    %c0_1 = arith.constant 0 : index
    %1 = vector.load %arg2[%c8, %c0_1] : memref<96x96xf32, #tpu.memory_space<vmem>>, vector<32x96xf32>
    %2 = arith.truncf %1 : vector<32x96xf32> to vector<32x96xbf16>
    %c40 = arith.constant 40 : index
    %c0_2 = arith.constant 0 : index
    %3 = vector.load %arg2[%c40, %c0_2] : memref<96x96xf32, #tpu.memory_space<vmem>>, vector<1x96xf32>
    %c48 = arith.constant 48 : index
    %c0_3 = arith.constant 0 : index
    %4 = vector.load %arg2[%c48, %c0_3] : memref<96x96xf32, #tpu.memory_space<vmem>>, vector<1x32xf32>
    %c56 = arith.constant 56 : index
    %c0_4 = arith.constant 0 : index
    %5 = vector.load %arg2[%c56, %c0_4] : memref<96x96xf32, #tpu.memory_space<vmem>>, vector<32x4xf32>
    %c88 = arith.constant 88 : index
    %c0_5 = arith.constant 0 : index
    %6 = vector.load %arg2[%c88, %c0_5] : memref<96x96xf32, #tpu.memory_space<vmem>>, vector<1x4xf32>
    %c0_6 = arith.constant 0 : index
    %c0_7 = arith.constant 0 : index
    %7 = vector.load %arg0[%c0_6, %c0_7] : memref<16x8xf32, #tpu.memory_space<vmem>>, vector<16x8xf32>
    %cst = arith.constant dense<0.000000e+00> : vector<16x96xf32>
    %8 = tpu.matmul %7, %0, %cst {dimension_numbers = #tpu.dot_dimension_numbers<[1], [0], [0], [1], [0, 0, 1, 1], [], []>} : vector<16x8xf32>, vector<8x96xf32>, vector<16x96xf32> -> vector<16x96xf32>
    %9 = vector.broadcast %3 : vector<1x96xf32> to vector<16x96xf32>
    %10 = arith.addf %8, %9 : vector<16x96xf32>
    %c0_8 = arith.constant 0 : index
    %c0_9 = arith.constant 0 : index
    %11 = vector.load %arg5[%c0_8, %c0_9] : memref<16x96xf32, #tpu.memory_space<vmem>>, vector<16x96xf32>
    tpu.vector_store %arg5[%c0_8, %c0_9], %10 {strides = array<i32>} : memref<16x96xf32, #tpu.memory_space<vmem>>, vector<16x96xf32>,
    %12 = vector.shape_cast %4 : vector<1x32xf32> to vector<1x32xf32>
    %13 = vector.broadcast %12 : vector<1x32xf32> to vector<2x32xf32>
    %c0_10 = arith.constant 0 : index
    %c0_11 = arith.constant 0 : index
    %14 = vector.load %arg1[%c0_10, %c0_11] : memref<2x32xf32, #tpu.memory_space<vmem>>, vector<2x32xf32>
    %c0_12 = arith.constant 0 : index
    %c0_13 = arith.constant 0 : index
    %15 = vector.load %arg5[%c0_12, %c0_13] : memref<16x96xf32, #tpu.memory_space<vmem>>, vector<2x96xf32>
    %16 = arith.truncf %14 : vector<2x32xf32> to vector<2x32xbf16>
    %cst_14 = arith.constant dense<0.000000e+00> : vector<2x96xf32>
    %17 = tpu.matmul %16, %2, %cst_14 {dimension_numbers = #tpu.dot_dimension_numbers<[1], [0], [0], [1], [0, 0, 1, 1], [], []>} : vector<2x32xbf16>, vector<32x96xbf16>, vector<2x96xf32> -> vector<2x96xf32>
    %18 = vector.extract_strided_slice %15 {offsets = [0, 0], sizes = [2, 64], strides = [1, 1]} : vector<2x96xf32> to vector<2x64xf32>
    %19 = vector.extract_strided_slice %17 {offsets = [0, 0], sizes = [2, 64], strides = [1, 1]} : vector<2x96xf32> to vector<2x64xf32>
    %20 = arith.addf %18, %19 : vector<2x64xf32>
    %cst_15 = arith.constant 5.000000e-01 : f32
    %21 = vector.broadcast %cst_15 : f32 to vector<2x64xf32>
    %22 = arith.mulf %21, %20 : vector<2x64xf32>
    %23 = math.tanh %22 : vector<2x64xf32>
    %cst_16 = arith.constant 5.000000e-01 : f32
    %24 = vector.broadcast %cst_16 : f32 to vector<2x64xf32>
    %25 = arith.mulf %24, %23 : vector<2x64xf32>
    %cst_17 = arith.constant 5.000000e-01 : f32
    %26 = vector.broadcast %cst_17 : f32 to vector<2x64xf32>
    %27 = arith.addf %25, %26 : vector<2x64xf32>
    %28 = vector.extract_strided_slice %27 {offsets = [0, 0], sizes = [2, 32], strides = [1, 1]} : vector<2x64xf32> to vector<2x32xf32>
    %29 = vector.extract_strided_slice %27 {offsets = [0, 32], sizes = [2, 32], strides = [1, 1]} : vector<2x64xf32> to vector<2x32xf32>
    %30 = vector.extract_strided_slice %15 {offsets = [0, 64], sizes = [2, 32], strides = [1, 1]} : vector<2x96xf32> to vector<2x32xf32>
    %31 = vector.extract_strided_slice %17 {offsets = [0, 64], sizes = [2, 32], strides = [1, 1]} : vector<2x96xf32> to vector<2x32xf32>
    %32 = arith.addf %31, %13 : vector<2x32xf32>
    %33 = arith.mulf %28, %32 : vector<2x32xf32>
    %34 = arith.addf %30, %33 : vector<2x32xf32>
    %35 = math.tanh %34 : vector<2x32xf32>
    %36 = arith.subf %14, %35 : vector<2x32xf32>
    %37 = arith.mulf %29, %36 : vector<2x32xf32>
    %38 = arith.addf %35, %37 : vector<2x32xf32>
    %c2 = arith.constant 2 : index
    %c0_18 = arith.constant 0 : index
    %39 = vector.load %arg5[%c2, %c0_18] : memref<16x96xf32, #tpu.memory_space<vmem>>, vector<2x96xf32>
    %40 = arith.truncf %38 : vector<2x32xf32> to vector<2x32xbf16>
    %cst_19 = arith.constant dense<0.000000e+00> : vector<2x96xf32>
    %41 = tpu.matmul %40, %2, %cst_19 {dimension_numbers = #tpu.dot_dimension_numbers<[1], [0], [0], [1], [0, 0, 1, 1], [], []>} : vector<2x32xbf16>, vector<32x96xbf16>, vector<2x96xf32> -> vector<2x96xf32>
    %42 = vector.extract_strided_slice %39 {offsets = [0, 0], sizes = [2, 64], strides = [1, 1]} : vector<2x96xf32> to vector<2x64xf32>
    %43 = vector.extract_strided_slice %41 {offsets = [0, 0], sizes = [2, 64], strides = [1, 1]} : vector<2x96xf32> to vector<2x64xf32>
    %44 = arith.addf %42, %43 : vector<2x64xf32>
    %cst_20 = arith.constant 5.000000e-01 : f32
    %45 = vector.broadcast %cst_20 : f32 to vector<2x64xf32>
    %46 = arith.mulf %45, %44 : vector<2x64xf32>
    %47 = math.tanh %46 : vector<2x64xf32>
    %cst_21 = arith.constant 5.000000e-01 : f32
    %48 = vector.broadcast %cst_21 : f32 to vector<2x64xf32>
    %49 = arith.mulf %48, %47 : vector<2x64xf32>
    %cst_22 = arith.constant 5.000000e-01 : f32
    %50 = vector.broadcast %cst_22 : f32 to vector<2x64xf32>
    %51 = arith.addf %49, %50 : vector<2x64xf32>
    %52 = vector.extract_strided_slice %51 {offsets = [0, 0], sizes = [2, 32], strides = [1, 1]} : vector<2x64xf32> to vector<2x32xf32>
    %53 = vector.extract_strided_slice %51 {offsets = [0, 32], sizes = [2, 32], strides = [1, 1]} : vector<2x64xf32> to vector<2x32xf32>
    %54 = vector.extract_strided_slice %39 {offsets = [0, 64], sizes = [2, 32], strides = [1, 1]} : vector<2x96xf32> to vector<2x32xf32>
    %55 = vector.extract_strided_slice %41 {offsets = [0, 64], sizes = [2, 32], strides = [1, 1]} : vector<2x96xf32> to vector<2x32xf32>
    %56 = arith.addf %55, %13 : vector<2x32xf32>
    %57 = arith.mulf %52, %56 : vector<2x32xf32>
    %58 = arith.addf %54, %57 : vector<2x32xf32>
    %59 = math.tanh %58 : vector<2x32xf32>
    %60 = arith.subf %38, %59 : vector<2x32xf32>
    %61 = arith.mulf %53, %60 : vector<2x32xf32>
    %62 = arith.addf %59, %61 : vector<2x32xf32>
    %c4 = arith.constant 4 : index
    %c0_23 = arith.constant 0 : index
    %63 = vector.load %arg5[%c4, %c0_23] : memref<16x96xf32, #tpu.memory_space<vmem>>, vector<2x96xf32>
    %64 = arith.truncf %62 : vector<2x32xf32> to vector<2x32xbf16>
    %cst_24 = arith.constant dense<0.000000e+00> : vector<2x96xf32>
    %65 = tpu.matmul %64, %2, %cst_24 {dimension_numbers = #tpu.dot_dimension_numbers<[1], [0], [0], [1], [0, 0, 1, 1], [], []>} : vector<2x32xbf16>, vector<32x96xbf16>, vector<2x96xf32> -> vector<2x96xf32>
    %66 = vector.extract_strided_slice %63 {offsets = [0, 0], sizes = [2, 64], strides = [1, 1]} : vector<2x96xf32> to vector<2x64xf32>
    %67 = vector.extract_strided_slice %65 {offsets = [0, 0], sizes = [2, 64], strides = [1, 1]} : vector<2x96xf32> to vector<2x64xf32>
    %68 = arith.addf %66, %67 : vector<2x64xf32>
    %cst_25 = arith.constant 5.000000e-01 : f32
    %69 = vector.broadcast %cst_25 : f32 to vector<2x64xf32>
    %70 = arith.mulf %69, %68 : vector<2x64xf32>
    %71 = math.tanh %70 : vector<2x64xf32>
    %cst_26 = arith.constant 5.000000e-01 : f32
    %72 = vector.broadcast %cst_26 : f32 to vector<2x64xf32>
    %73 = arith.mulf %72, %71 : vector<2x64xf32>
    %cst_27 = arith.constant 5.000000e-01 : f32
    %74 = vector.broadcast %cst_27 : f32 to vector<2x64xf32>
    %75 = arith.addf %73, %74 : vector<2x64xf32>
    %76 = vector.extract_strided_slice %75 {offsets = [0, 0], sizes = [2, 32], strides = [1, 1]} : vector<2x64xf32> to vector<2x32xf32>
    %77 = vector.extract_strided_slice %75 {offsets = [0, 32], sizes = [2, 32], strides = [1, 1]} : vector<2x64xf32> to vector<2x32xf32>
    %78 = vector.extract_strided_slice %63 {offsets = [0, 64], sizes = [2, 32], strides = [1, 1]} : vector<2x96xf32> to vector<2x32xf32>
    %79 = vector.extract_strided_slice %65 {offsets = [0, 64], sizes = [2, 32], strides = [1, 1]} : vector<2x96xf32> to vector<2x32xf32>
    %80 = arith.addf %79, %13 : vector<2x32xf32>
    %81 = arith.mulf %76, %80 : vector<2x32xf32>
    %82 = arith.addf %78, %81 : vector<2x32xf32>
    %83 = math.tanh %82 : vector<2x32xf32>
    %84 = arith.subf %62, %83 : vector<2x32xf32>
    %85 = arith.mulf %77, %84 : vector<2x32xf32>
    %86 = arith.addf %83, %85 : vector<2x32xf32>
    %c6 = arith.constant 6 : index
    %c0_28 = arith.constant 0 : index
    %87 = vector.load %arg5[%c6, %c0_28] : memref<16x96xf32, #tpu.memory_space<vmem>>, vector<2x96xf32>
    %88 = arith.truncf %86 : vector<2x32xf32> to vector<2x32xbf16>
    %cst_29 = arith.constant dense<0.000000e+00> : vector<2x96xf32>
    %89 = tpu.matmul %88, %2, %cst_29 {dimension_numbers = #tpu.dot_dimension_numbers<[1], [0], [0], [1], [0, 0, 1, 1], [], []>} : vector<2x32xbf16>, vector<32x96xbf16>, vector<2x96xf32> -> vector<2x96xf32>
    %90 = vector.extract_strided_slice %87 {offsets = [0, 0], sizes = [2, 64], strides = [1, 1]} : vector<2x96xf32> to vector<2x64xf32>
    %91 = vector.extract_strided_slice %89 {offsets = [0, 0], sizes = [2, 64], strides = [1, 1]} : vector<2x96xf32> to vector<2x64xf32>
    %92 = arith.addf %90, %91 : vector<2x64xf32>
    %cst_30 = arith.constant 5.000000e-01 : f32
    %93 = vector.broadcast %cst_30 : f32 to vector<2x64xf32>
    %94 = arith.mulf %93, %92 : vector<2x64xf32>
    %95 = math.tanh %94 : vector<2x64xf32>
    %cst_31 = arith.constant 5.000000e-01 : f32
    %96 = vector.broadcast %cst_31 : f32 to vector<2x64xf32>
    %97 = arith.mulf %96, %95 : vector<2x64xf32>
    %cst_32 = arith.constant 5.000000e-01 : f32
    %98 = vector.broadcast %cst_32 : f32 to vector<2x64xf32>
    %99 = arith.addf %97, %98 : vector<2x64xf32>
    %100 = vector.extract_strided_slice %99 {offsets = [0, 0], sizes = [2, 32], strides = [1, 1]} : vector<2x64xf32> to vector<2x32xf32>
    %101 = vector.extract_strided_slice %99 {offsets = [0, 32], sizes = [2, 32], strides = [1, 1]} : vector<2x64xf32> to vector<2x32xf32>
    %102 = vector.extract_strided_slice %87 {offsets = [0, 64], sizes = [2, 32], strides = [1, 1]} : vector<2x96xf32> to vector<2x32xf32>
    %103 = vector.extract_strided_slice %89 {offsets = [0, 64], sizes = [2, 32], strides = [1, 1]} : vector<2x96xf32> to vector<2x32xf32>
    %104 = arith.addf %103, %13 : vector<2x32xf32>
    %105 = arith.mulf %100, %104 : vector<2x32xf32>
    %106 = arith.addf %102, %105 : vector<2x32xf32>
    %107 = math.tanh %106 : vector<2x32xf32>
    %108 = arith.subf %86, %107 : vector<2x32xf32>
    %109 = arith.mulf %101, %108 : vector<2x32xf32>
    %110 = arith.addf %107, %109 : vector<2x32xf32>
    %c8_33 = arith.constant 8 : index
    %c0_34 = arith.constant 0 : index
    %111 = vector.load %arg5[%c8_33, %c0_34] : memref<16x96xf32, #tpu.memory_space<vmem>>, vector<2x96xf32>
    %112 = arith.truncf %110 : vector<2x32xf32> to vector<2x32xbf16>
    %cst_35 = arith.constant dense<0.000000e+00> : vector<2x96xf32>
    %113 = tpu.matmul %112, %2, %cst_35 {dimension_numbers = #tpu.dot_dimension_numbers<[1], [0], [0], [1], [0, 0, 1, 1], [], []>} : vector<2x32xbf16>, vector<32x96xbf16>, vector<2x96xf32> -> vector<2x96xf32>
    %114 = vector.extract_strided_slice %111 {offsets = [0, 0], sizes = [2, 64], strides = [1, 1]} : vector<2x96xf32> to vector<2x64xf32>
    %115 = vector.extract_strided_slice %113 {offsets = [0, 0], sizes = [2, 64], strides = [1, 1]} : vector<2x96xf32> to vector<2x64xf32>
    %116 = arith.addf %114, %115 : vector<2x64xf32>
    %cst_36 = arith.constant 5.000000e-01 : f32
    %117 = vector.broadcast %cst_36 : f32 to vector<2x64xf32>
    %118 = arith.mulf %117, %116 : vector<2x64xf32>
    %119 = math.tanh %118 : vector<2x64xf32>
    %cst_37 = arith.constant 5.000000e-01 : f32
    %120 = vector.broadcast %cst_37 : f32 to vector<2x64xf32>
    %121 = arith.mulf %120, %119 : vector<2x64xf32>
    %cst_38 = arith.constant 5.000000e-01 : f32
    %122 = vector.broadcast %cst_38 : f32 to vector<2x64xf32>
    %123 = arith.addf %121, %122 : vector<2x64xf32>
    %124 = vector.extract_strided_slice %123 {offsets = [0, 0], sizes = [2, 32], strides = [1, 1]} : vector<2x64xf32> to vector<2x32xf32>
    %125 = vector.extract_strided_slice %123 {offsets = [0, 32], sizes = [2, 32], strides = [1, 1]} : vector<2x64xf32> to vector<2x32xf32>
    %126 = vector.extract_strided_slice %111 {offsets = [0, 64], sizes = [2, 32], strides = [1, 1]} : vector<2x96xf32> to vector<2x32xf32>
    %127 = vector.extract_strided_slice %113 {offsets = [0, 64], sizes = [2, 32], strides = [1, 1]} : vector<2x96xf32> to vector<2x32xf32>
    %128 = arith.addf %127, %13 : vector<2x32xf32>
    %129 = arith.mulf %124, %128 : vector<2x32xf32>
    %130 = arith.addf %126, %129 : vector<2x32xf32>
    %131 = math.tanh %130 : vector<2x32xf32>
    %132 = arith.subf %110, %131 : vector<2x32xf32>
    %133 = arith.mulf %125, %132 : vector<2x32xf32>
    %134 = arith.addf %131, %133 : vector<2x32xf32>
    %c10 = arith.constant 10 : index
    %c0_39 = arith.constant 0 : index
    %135 = vector.load %arg5[%c10, %c0_39] : memref<16x96xf32, #tpu.memory_space<vmem>>, vector<2x96xf32>
    %136 = arith.truncf %134 : vector<2x32xf32> to vector<2x32xbf16>
    %cst_40 = arith.constant dense<0.000000e+00> : vector<2x96xf32>
    %137 = tpu.matmul %136, %2, %cst_40 {dimension_numbers = #tpu.dot_dimension_numbers<[1], [0], [0], [1], [0, 0, 1, 1], [], []>} : vector<2x32xbf16>, vector<32x96xbf16>, vector<2x96xf32> -> vector<2x96xf32>
    %138 = vector.extract_strided_slice %135 {offsets = [0, 0], sizes = [2, 64], strides = [1, 1]} : vector<2x96xf32> to vector<2x64xf32>
    %139 = vector.extract_strided_slice %137 {offsets = [0, 0], sizes = [2, 64], strides = [1, 1]} : vector<2x96xf32> to vector<2x64xf32>
    %140 = arith.addf %138, %139 : vector<2x64xf32>
    %cst_41 = arith.constant 5.000000e-01 : f32
    %141 = vector.broadcast %cst_41 : f32 to vector<2x64xf32>
    %142 = arith.mulf %141, %140 : vector<2x64xf32>
    %143 = math.tanh %142 : vector<2x64xf32>
    %cst_42 = arith.constant 5.000000e-01 : f32
    %144 = vector.broadcast %cst_42 : f32 to vector<2x64xf32>
    %145 = arith.mulf %144, %143 : vector<2x64xf32>
    %cst_43 = arith.constant 5.000000e-01 : f32
    %146 = vector.broadcast %cst_43 : f32 to vector<2x64xf32>
    %147 = arith.addf %145, %146 : vector<2x64xf32>
    %148 = vector.extract_strided_slice %147 {offsets = [0, 0], sizes = [2, 32], strides = [1, 1]} : vector<2x64xf32> to vector<2x32xf32>
    %149 = vector.extract_strided_slice %147 {offsets = [0, 32], sizes = [2, 32], strides = [1, 1]} : vector<2x64xf32> to vector<2x32xf32>
    %150 = vector.extract_strided_slice %135 {offsets = [0, 64], sizes = [2, 32], strides = [1, 1]} : vector<2x96xf32> to vector<2x32xf32>
    %151 = vector.extract_strided_slice %137 {offsets = [0, 64], sizes = [2, 32], strides = [1, 1]} : vector<2x96xf32> to vector<2x32xf32>
    %152 = arith.addf %151, %13 : vector<2x32xf32>
    %153 = arith.mulf %148, %152 : vector<2x32xf32>
    %154 = arith.addf %150, %153 : vector<2x32xf32>
    %155 = math.tanh %154 : vector<2x32xf32>
    %156 = arith.subf %134, %155 : vector<2x32xf32>
    %157 = arith.mulf %149, %156 : vector<2x32xf32>
    %158 = arith.addf %155, %157 : vector<2x32xf32>
    %c12 = arith.constant 12 : index
    %c0_44 = arith.constant 0 : index
    %159 = vector.load %arg5[%c12, %c0_44] : memref<16x96xf32, #tpu.memory_space<vmem>>, vector<2x96xf32>
    %160 = arith.truncf %158 : vector<2x32xf32> to vector<2x32xbf16>
    %cst_45 = arith.constant dense<0.000000e+00> : vector<2x96xf32>
    %161 = tpu.matmul %160, %2, %cst_45 {dimension_numbers = #tpu.dot_dimension_numbers<[1], [0], [0], [1], [0, 0, 1, 1], [], []>} : vector<2x32xbf16>, vector<32x96xbf16>, vector<2x96xf32> -> vector<2x96xf32>
    %162 = vector.extract_strided_slice %159 {offsets = [0, 0], sizes = [2, 64], strides = [1, 1]} : vector<2x96xf32> to vector<2x64xf32>
    %163 = vector.extract_strided_slice %161 {offsets = [0, 0], sizes = [2, 64], strides = [1, 1]} : vector<2x96xf32> to vector<2x64xf32>
    %164 = arith.addf %162, %163 : vector<2x64xf32>
    %cst_46 = arith.constant 5.000000e-01 : f32
    %165 = vector.broadcast %cst_46 : f32 to vector<2x64xf32>
    %166 = arith.mulf %165, %164 : vector<2x64xf32>
    %167 = math.tanh %166 : vector<2x64xf32>
    %cst_47 = arith.constant 5.000000e-01 : f32
    %168 = vector.broadcast %cst_47 : f32 to vector<2x64xf32>
    %169 = arith.mulf %168, %167 : vector<2x64xf32>
    %cst_48 = arith.constant 5.000000e-01 : f32
    %170 = vector.broadcast %cst_48 : f32 to vector<2x64xf32>
    %171 = arith.addf %169, %170 : vector<2x64xf32>
    %172 = vector.extract_strided_slice %171 {offsets = [0, 0], sizes = [2, 32], strides = [1, 1]} : vector<2x64xf32> to vector<2x32xf32>
    %173 = vector.extract_strided_slice %171 {offsets = [0, 32], sizes = [2, 32], strides = [1, 1]} : vector<2x64xf32> to vector<2x32xf32>
    %174 = vector.extract_strided_slice %159 {offsets = [0, 64], sizes = [2, 32], strides = [1, 1]} : vector<2x96xf32> to vector<2x32xf32>
    %175 = vector.extract_strided_slice %161 {offsets = [0, 64], sizes = [2, 32], strides = [1, 1]} : vector<2x96xf32> to vector<2x32xf32>
    %176 = arith.addf %175, %13 : vector<2x32xf32>
    %177 = arith.mulf %172, %176 : vector<2x32xf32>
    %178 = arith.addf %174, %177 : vector<2x32xf32>
    %179 = math.tanh %178 : vector<2x32xf32>
    %180 = arith.subf %158, %179 : vector<2x32xf32>
    %181 = arith.mulf %173, %180 : vector<2x32xf32>
    %182 = arith.addf %179, %181 : vector<2x32xf32>
    %c14 = arith.constant 14 : index
    %c0_49 = arith.constant 0 : index
    %183 = vector.load %arg5[%c14, %c0_49] : memref<16x96xf32, #tpu.memory_space<vmem>>, vector<2x96xf32>
    %184 = arith.truncf %182 : vector<2x32xf32> to vector<2x32xbf16>
    %cst_50 = arith.constant dense<0.000000e+00> : vector<2x96xf32>
    %185 = tpu.matmul %184, %2, %cst_50 {dimension_numbers = #tpu.dot_dimension_numbers<[1], [0], [0], [1], [0, 0, 1, 1], [], []>} : vector<2x32xbf16>, vector<32x96xbf16>, vector<2x96xf32> -> vector<2x96xf32>
    %186 = vector.extract_strided_slice %183 {offsets = [0, 0], sizes = [2, 64], strides = [1, 1]} : vector<2x96xf32> to vector<2x64xf32>
    %187 = vector.extract_strided_slice %185 {offsets = [0, 0], sizes = [2, 64], strides = [1, 1]} : vector<2x96xf32> to vector<2x64xf32>
    %188 = arith.addf %186, %187 : vector<2x64xf32>
    %cst_51 = arith.constant 5.000000e-01 : f32
    %189 = vector.broadcast %cst_51 : f32 to vector<2x64xf32>
    %190 = arith.mulf %189, %188 : vector<2x64xf32>
    %191 = math.tanh %190 : vector<2x64xf32>
    %cst_52 = arith.constant 5.000000e-01 : f32
    %192 = vector.broadcast %cst_52 : f32 to vector<2x64xf32>
    %193 = arith.mulf %192, %191 : vector<2x64xf32>
    %cst_53 = arith.constant 5.000000e-01 : f32
    %194 = vector.broadcast %cst_53 : f32 to vector<2x64xf32>
    %195 = arith.addf %193, %194 : vector<2x64xf32>
    %196 = vector.extract_strided_slice %195 {offsets = [0, 0], sizes = [2, 32], strides = [1, 1]} : vector<2x64xf32> to vector<2x32xf32>
    %197 = vector.extract_strided_slice %195 {offsets = [0, 32], sizes = [2, 32], strides = [1, 1]} : vector<2x64xf32> to vector<2x32xf32>
    %198 = vector.extract_strided_slice %183 {offsets = [0, 64], sizes = [2, 32], strides = [1, 1]} : vector<2x96xf32> to vector<2x32xf32>
    %199 = vector.extract_strided_slice %185 {offsets = [0, 64], sizes = [2, 32], strides = [1, 1]} : vector<2x96xf32> to vector<2x32xf32>
    %200 = arith.addf %199, %13 : vector<2x32xf32>
    %201 = arith.mulf %196, %200 : vector<2x32xf32>
    %202 = arith.addf %198, %201 : vector<2x32xf32>
    %203 = math.tanh %202 : vector<2x32xf32>
    %204 = arith.subf %182, %203 : vector<2x32xf32>
    %205 = arith.mulf %197, %204 : vector<2x32xf32>
    %206 = arith.addf %203, %205 : vector<2x32xf32>
    %c0_54 = arith.constant 0 : index
    %c0_55 = arith.constant 0 : index
    %207 = vector.load %arg3[%c0_54, %c0_55] : memref<2x32xf32, #tpu.memory_space<vmem>>, vector<2x32xf32>
    tpu.vector_store %arg3[%c0_54, %c0_55], %206 {strides = array<i32>} : memref<2x32xf32, #tpu.memory_space<vmem>>, vector<2x32xf32>,
    %cst_56 = arith.constant dense<0.000000e+00> : vector<2x4xf32>
    %208 = tpu.matmul %38, %5, %cst_56 {dimension_numbers = #tpu.dot_dimension_numbers<[1], [0], [0], [1], [0, 0, 1, 1], [], []>} : vector<2x32xf32>, vector<32x4xf32>, vector<2x4xf32> -> vector<2x4xf32>
    %209 = vector.broadcast %6 : vector<1x4xf32> to vector<2x4xf32>
    %210 = arith.addf %208, %209 : vector<2x4xf32>
    %c0_57 = arith.constant 0 : index
    %c0_58 = arith.constant 0 : index
    %211 = vector.load %arg4[%c0_57, %c0_58] : memref<2x4xf32, #tpu.memory_space<vmem>>, vector<2x4xf32>
    tpu.vector_store %arg4[%c0_57, %c0_58], %210 {strides = array<i32>} : memref<2x4xf32, #tpu.memory_space<vmem>>, vector<2x4xf32>,
    return
  }
}

</mosaic_0001>

<llo_original>
// kernel: model_controller_forward.1
$region0: #{model_controller_forward.1}
  #allocation0 [shape = 'u32[]', space=smem, size = 0x4, offset = 0x4, fixed_abs, tag = 'smem constant byte address 0x4 - core index']
  #allocation1 [shape = 'u32[144,128]{1,0:T(1,128)}', space=vmem, size = 0x12000, scoped, tag = 'internal scratch']
  #allocation2 [shape = 'f32[16,96]{1,0:T(8,128)}', space=vmem, size = 0x2000, scoped, tag = 'scratch operand']
  %s0 = inlined_call_operand.hbm [shape: f32[16,8], index: 0, kind: input, shape index: {}]
  %s1 = inlined_call_operand.vmem [shape: f32[2,32], index: 1, kind: input, shape index: {}]
  %s2 = inlined_call_operand.hbm [shape: f32[96,96], index: 2, kind: input, shape index: {}]
  %s3 = inlined_call_operand.hbm [shape: f32[2,32], index: 3, kind: output, shape index: {0}]
  %s4 = inlined_call_operand.hbm [shape: f32[2,4], index: 4, kind: output, shape index: {1}]
  %5 = xla_tuple %s3, %s4
  %s6 = sld [smem:[#allocation0]]
  $region38: #{model_controller_forward.1} parent=0
    _
  %s8 = ssub.s32 1, %s6
  %s9 = scalar_select 0, %s8, %s6
  $region1: #{model_controller_forward.1} parent=0
    #allocation3 [shape = 'u8[8192]{0}', space=vmem, size = 0x2000, scoped, tag = 'input window, operand 0, single buffered']
    #allocation4 [shape = 's32[1]{0}', space=sflag, size = 0x4, scoped, tag = 'scoped memory for model_controller_forward.1']
    #allocation5 [shape = 's32[1]{0}', space=sflag, size = 0x4, scoped, tag = 'scoped memory for model_controller_forward.1']
    #allocation6 [shape = 'u8[49152]{0}', space=vmem, size = 0xc000, scoped, tag = 'input window, operand 2, single buffered']
    #allocation7 [shape = 's32[1]{0}', space=sflag, size = 0x4, scoped, tag = 'scoped memory for model_controller_forward.1']
    #allocation8 [shape = 'u8[1024]{0}', space=vmem, size = 0x400, scoped, tag = 'output window, operand 0, single buffered']
    #allocation9 [shape = 'u8[1024]{0}', space=vmem, size = 0x400, scoped, tag = 'output window, operand 1, single buffered']
    #allocation10 [shape = 's32[1]{0}', space=sflag, size = 0x4, scoped, tag = 'scoped memory for model_controller_forward.1']
    %10 = vsyncpa [#allocation4], 0
    %11 = vsyncpa [#allocation7], 0
    %12 = vsyncpa [#allocation5], 0
    %13 = vsyncpa [#allocation10], 0
    // Predicated region
    $region2: #{model_controller_forward.1} parent=1 // pred_check
      _
    $region3: #{model_controller_forward.1} parent=1 // pred_check_branch
      %15 = sbr.rel (0) target = $region5
    $region4: #{model_controller_forward.1} parent=1 // pred_region
      %s17 = ssub.s32 256, 256
      %18 = vsyncadd [#allocation4], %s17
      %s19 = sshll.u32 [#allocation3], 4
      %s20 = int_to_ptr.vmem [resolvable:$true] %s19
      %25 = dma.hbm_to_vmem [thread:$0]  %s0, 256, %s20, [#allocation4], 128, 128, 8
    $region5: #{model_controller_forward.1} parent=1 // pred_fallthru
      _
    // Predicated region
    $region6: #{model_controller_forward.1} parent=1 // pred_check
      _
    $region7: #{model_controller_forward.1} parent=1 // pred_check_branch
      %27 = sbr.rel (0) target = $region9
    $region8: #{model_controller_forward.1} parent=1 // pred_region
      _
    $region9: #{model_controller_forward.1} parent=1 // pred_fallthru
      _
    // Predicated region
    $region10: #{model_controller_forward.1} parent=1 // pred_check
      _
    $region11: #{model_controller_forward.1} parent=1 // pred_check_branch
      %29 = sbr.rel (0) target = $region13
    $region12: #{model_controller_forward.1} parent=1 // pred_region
      %s31 = ssub.s32 1536, 1536
      %32 = vsyncadd [#allocation7], %s31
      %s33 = sshll.u32 [#allocation6], 4
      %s34 = int_to_ptr.vmem [resolvable:$true] %s33
      %39 = dma.hbm_to_vmem [thread:$0]  %s2, 1536, %s34, [#allocation7], 128, 128, 8
    $region13: #{model_controller_forward.1} parent=1 // pred_fallthru
      _
    // Predicated region
    $region14: #{model_controller_forward.1} parent=1 // pred_check
      _
    $region15: #{model_controller_forward.1} parent=1 // pred_check_branch
      %41 = sbr.rel (0) target = $region17
    $region16: #{model_controller_forward.1} parent=1 // pred_region
      %42 = dma.done [#allocation4], 256
    $region17: #{model_controller_forward.1} parent=1 // pred_fallthru
      _
    // Predicated region
    $region18: #{model_controller_forward.1} parent=1 // pred_check
      _
    $region19: #{model_controller_forward.1} parent=1 // pred_check_branch
      %44 = sbr.rel (0) target = $region21
    $region20: #{model_controller_forward.1} parent=1 // pred_region
      %45 = dma.done [#allocation7], 1536
    $region21: #{model_controller_forward.1} parent=1 // pred_fallthru
      _
    %v47 = vld [vmem:[#allocation6] sm:$0xff]
    %v48 = vld [vmem:[#allocation6 + $0x8] sm:$0xff]
    %v49 = vld [vmem:[#allocation6 + $0x10] sm:$0xff]
    %v50 = vld [vmem:[#allocation6 + $0x18] sm:$0xff]
    %v51 = vld [vmem:[#allocation6 + $0x20] sm:$0xff]
    %v52 = vpack.c.bf16 %v49, %v48
    %v53 = vpack.c.bf16 %v51, %v50
    %v54 = vld [vmem:[#allocation6 + $0x28] sm:$0x1]
    %v55 = vld [vmem:[#allocation6 + $0x30] sm:$0x1]
    %v56 = vld [vmem:[#allocation6 + $0x38] sm:$0xff]
    %v57 = vld [vmem:[#allocation6 + $0x40] sm:$0xff]
    %v58 = vld [vmem:[#allocation6 + $0x48] sm:$0xff]
    %v59 = vld [vmem:[#allocation6 + $0x50] sm:$0xff]
    %v60 = vld [vmem:[#allocation6 + $0x58] sm:$0x1]
    %v61 = vld [vmem:[#allocation3] sm:$0xff]
    %v62 = vld [vmem:[#allocation3 + $0x8] sm:$0xff]
    %v63 = vlaneseq
    %v64 = vshrl.u32 %v63, 7
    %v65 = vsub.s32 0, %v64
    %v66 = vrot.slane %v54, %v65
    %vm67 = vcmask 64512
    %v69 = vsel %vm67, %v61, 0
    %v72 = vsel %vm67, %v62, 0
    %74 = vmatprep.subr.mxu0 0.0
    %75 = vmatpush1.msra.mxu0 %v47
    %76 = vmatprep.subr.mxu0 0.0
    %77 = vmatpush1.msra.mxu0 0.0
    %78 = vmatprep.subr.mxu0 0.0
    %79 = vmatpush1.msra.mxu0 0.0
    %80 = vmatprep.subr.mxu0 0.0
    %81 = vmatpush1.msra.mxu0 0.0
    %82 = vmatprep.subr.mxu0 0.0
    %83 = vmatpush1.msra.mxu0 0.0
    %84 = vmatprep.subr.mxu0 0.0
    %85 = vmatpush1.msra.mxu0 0.0
    %86 = vmatprep.subr.mxu0 0.0
    %87 = vmatpush1.msra.mxu0 0.0
    %88 = vmatprep.subr.mxu0 0.0
    %89 = vmatpush1.msra.mxu0 0.0
    %90 = vmatprep.subr.mxu0 0.0
    %91 = vmatpush1.msra.mxu0 0.0
    %92 = vmatprep.subr.mxu0 0.0
    %93 = vmatpush1.msra.mxu0 0.0
    %94 = vmatprep.subr.mxu0 0.0
    %95 = vmatpush1.msra.mxu0 0.0
    %96 = vmatprep.subr.mxu0 0.0
    %97 = vmatpush1.msra.mxu0 0.0
    %98 = vmatprep.subr.mxu0 0.0
    %99 = vmatpush1.msra.mxu0 0.0
    %100 = vmatprep.subr.mxu0 0.0
    %101 = vmatpush1.msra.mxu0 0.0
    %102 = vmatprep.subr.mxu0 0.0
    %103 = vmatpush1.msra.mxu0 0.0
    %104 = vmatprep.subr.mxu0 0.0
    %105 = vmatpush1.msra.mxu0 0.0
    %106 = vmatprep.subr.mxu0 0.0
    %107 = vmatpush1.msra.mxu0 0.0
    %108 = vmatprep.subr.mxu0 0.0
    %109 = vmatpush1.msra.mxu0 0.0
    %110 = vmatprep.subr.mxu0 0.0
    %111 = vmatpush1.msra.mxu0 0.0
    %112 = vmatprep.subr.mxu0 0.0
    %113 = vmatpush1.msra.mxu0 0.0
    %114 = vmatprep.subr.mxu0 0.0
    %115 = vmatpush1.msra.mxu0 0.0
    %116 = vmatprep.subr.mxu0 0.0
    %117 = vmatpush1.msra.mxu0 0.0
    %118 = vmatprep.subr.mxu0 0.0
    %119 = vmatpush1.msra.mxu0 0.0
    %120 = vmatprep.subr.mxu0 0.0
    %121 = vmatpush1.msra.mxu0 0.0
    %122 = vmatprep.subr.mxu0 0.0
    %123 = vmatpush1.msra.mxu0 0.0
    %124 = vmatprep.subr.mxu0 0.0
    %125 = vmatpush1.msra.mxu0 0.0
    %126 = vmatprep.subr.mxu0 0.0
    %127 = vmatpush1.msra.mxu0 0.0
    %128 = vmatprep.subr.mxu0 0.0
    %129 = vmatpush1.msra.mxu0 0.0
    %130 = vmatprep.subr.mxu0 0.0
    %131 = vmatpush1.msra.mxu0 0.0
    %132 = vmatprep.subr.mxu0 0.0
    %133 = vmatpush1.msra.mxu0 0.0
    %134 = vmatprep.subr.mxu0 0.0
    %135 = vmatpush1.msra.mxu0 0.0
    %136 = vmatprep.subr.mxu0 0.0
    %137 = vmatpush1.msra.mxu0 0.0
    %138 = vmatprep.mubr.f32.mxu0 0.0
    %139 = vmatmul.mubr.f32.gmra.mrb[0].mxu0 %v69
    %v140 = vpop.f32.mrb[0].mxu0
    %v141 = vadd.f32 %v66, %v140
    %v142 = vpop.f32.mrb[0].mxu0
    %143 = vmatprep.mubr.f32.mxu0 0.0
    %144 = vmatmul.mubr.f32.gmra.mrb[0].mxu0 %v72
    %v145 = vpop.f32.mrb[0].mxu0
    %v146 = vadd.f32 %v66, %v145
    %v147 = vpop.f32.mrb[0].mxu0
    %148 = vdwg.mxu0
    %vm149 = vcmask 785408
    %150 = vst.msk [vmem:[#allocation2] sm:$0xff] %vm149, %v141
    %151 = vst.msk [vmem:[#allocation2 + $0x8] sm:$0xff] %vm149, %v146
    %v152 = vlaneseq
    %v153 = vshrl.u32 %v152, 7
    %v154 = vsub.s32 0, %v153
    %v155 = vrot.slane %v55, %v154
    %v156 = vld [vmem:[%s1] sm:$0x3]
    %v157 = vld [vmem:[#allocation2] sm:$0x3]
    %v158 = vpack.c.bf16 %v156, %v156
    %vm159 = vcmask 261120
    %v161 = vsel %vm159, %v158, 0
    %163 = vmatprep.subr.bf16.mxu0 0
    %164 = vmatpush1.bf16.msra.mxu0 %v52
    %165 = vmatprep.subr.bf16.mxu0 0
    %166 = vmatpush1.bf16.msra.mxu0 %v53
    %167 = vmatprep.subr.bf16.mxu0 0
    %168 = vmatpush1.bf16.msra.mxu0 0
    %169 = vmatprep.subr.bf16.mxu0 0
    %170 = vmatpush1.bf16.msra.mxu0 0
    %171 = vmatprep.subr.bf16.mxu0 0
    %172 = vmatpush1.bf16.msra.mxu0 0
    %173 = vmatprep.subr.bf16.mxu0 0
    %174 = vmatpush1.bf16.msra.mxu0 0
    %175 = vmatprep.subr.bf16.mxu0 0
    %176 = vmatpush1.bf16.msra.mxu0 0
    %177 = vmatprep.subr.bf16.mxu0 0
    %178 = vmatpush1.bf16.msra.mxu0 0
    %179 = vmatprep.subr.bf16.mxu0 0
    %180 = vmatpush1.bf16.msra.mxu0 0
    %181 = vmatprep.subr.bf16.mxu0 0
    %182 = vmatpush1.bf16.msra.mxu0 0
    %183 = vmatprep.subr.bf16.mxu0 0
    %184 = vmatpush1.bf16.msra.mxu0 0
    %185 = vmatprep.subr.bf16.mxu0 0
    %186 = vmatpush1.bf16.msra.mxu0 0
    %187 = vmatprep.subr.bf16.mxu0 0
    %188 = vmatpush1.bf16.msra.mxu0 0
    %189 = vmatprep.subr.bf16.mxu0 0
    %190 = vmatpush1.bf16.msra.mxu0 0
    %191 = vmatprep.subr.bf16.mxu0 0
    %192 = vmatpush1.bf16.msra.mxu0 0
    %193 = vmatprep.subr.bf16.mxu0 0
    %194 = vmatpush1.bf16.msra.mxu0 0
    %195 = vmatprep.mubr.bf16.mxu0 0
    %196 = vmatmul.mubr.bf16.gmra.mrb[0].mxu0 %v161
    %v197 = vpop.f32.mrb[0].mxu0
    %v198 = vadd.f32 0.0, %v197
    %v199 = vpop.f32.mrb[0].mxu0
    %v200 = vpop.f32.mrb[0].mxu0
    %v201 = vpop.f32.mrb[0].mxu0
    %202 = vdwg.mxu0
    %v203 = vadd.f32 %v157, %v198
    %v204 = vmul.f32 %v203, 0.5
    %v205 = vtanh.pop %v204
    %v206 = vmul.f32 %v205, 0.5
    %v207 = vadd.f32 %v206, 0.5
    %209 = vrot.lane.b32.xlu0 %v155, 64
    %v210 = vpop.permute.xlu0 %209
    %v212 = vadd.f32 %v198, %v210
    %214 = vrot.lane.b32.xlu0 %v212, 64
    %v215 = vpop.permute.xlu0 %214
    %v217 = vmul.f32 %v207, %v215
    %219 = vrot.lane.b32.xlu0 %v217, 64
    %v220 = vpop.permute.xlu0 %219
    %v222 = vadd.f32 %v157, %v220
    %v223 = vtanh.pop %v222
    %225 = vrot.lane.b32.xlu0 %v223, 64
    %v226 = vpop.permute.xlu0 %225
    %v228 = vsub.f32 %v156, %v226
    %230 = vrot.lane.b32.xlu0 %v228, 32
    %v231 = vpop.permute.xlu0 %230
    %v233 = vmul.f32 %v207, %v231
    %235 = vrot.lane.b32.xlu0 %v233, 32
    %v236 = vpop.permute.xlu0 %235
    %v238 = vadd.f32 %v223, %v236
    %v239 = vld [vmem:[#allocation2 + $0x2] sm:$0x3]
    %v240 = vpack.c.bf16 %v238, %v238
    %242 = vrot.lane.b32.xlu0 %v240, 64
    %v243 = vpop.permute.xlu0 %242
    %v245 = vsel %vm159, %v243, 0
    %247 = vmatprep.subr.bf16.mxu0 0
    %248 = vmatpush1.bf16.msra.mxu0 %v52
    %249 = vmatprep.subr.bf16.mxu0 0
    %250 = vmatpush1.bf16.msra.mxu0 %v53
    %251 = vmatprep.subr.bf16.mxu0 0
    %252 = vmatpush1.bf16.msra.mxu0 0
    %253 = vmatprep.subr.bf16.mxu0 0
    %254 = vmatpush1.bf16.msra.mxu0 0
    %255 = vmatprep.subr.bf16.mxu0 0
    %256 = vmatpush1.bf16.msra.mxu0 0
    %257 = vmatprep.subr.bf16.mxu0 0
    %258 = vmatpush1.bf16.msra.mxu0 0
    %259 = vmatprep.subr.bf16.mxu0 0
    %260 = vmatpush1.bf16.msra.mxu0 0
    %261 = vmatprep.subr.bf16.mxu0 0
    %262 = vmatpush1.bf16.msra.mxu0 0
    %263 = vmatprep.subr.bf16.mxu0 0
    %264 = vmatpush1.bf16.msra.mxu0 0
    %265 = vmatprep.subr.bf16.mxu0 0
    %266 = vmatpush1.bf16.msra.mxu0 0
    %267 = vmatprep.subr.bf16.mxu0 0
    %268 = vmatpush1.bf16.msra.mxu0 0
    %269 = vmatprep.subr.bf16.mxu0 0
    %270 = vmatpush1.bf16.msra.mxu0 0
    %271 = vmatprep.subr.bf16.mxu0 0
    %272 = vmatpush1.bf16.msra.mxu0 0
    %273 = vmatprep.subr.bf16.mxu0 0
    %274 = vmatpush1.bf16.msra.mxu0 0
    %275 = vmatprep.subr.bf16.mxu0 0
    %276 = vmatpush1.bf16.msra.mxu0 0
    %277 = vmatprep.subr.bf16.mxu0 0
    %278 = vmatpush1.bf16.msra.mxu0 0
    %279 = vmatprep.mubr.bf16.mxu0 0
    %280 = vmatmul.mubr.bf16.gmra.mrb[0].mxu0 %v245
    %v281 = vpop.f32.mrb[0].mxu0
    %v282 = vadd.f32 0.0, %v281
    %v283 = vpop.f32.mrb[0].mxu0
    %v284 = vpop.f32.mrb[0].mxu0
    %v285 = vpop.f32.mrb[0].mxu0
    %286 = vdwg.mxu0
    %v287 = vadd.f32 %v239, %v282
    %v288 = vmul.f32 %v287, 0.5
    %v289 = vtanh.pop %v288
    %v290 = vmul.f32 %v289, 0.5
    %v291 = vadd.f32 %v290, 0.5
    %v292 = vadd.f32 %v282, %v210
    %294 = vrot.lane.b32.xlu0 %v292, 64
    %v295 = vpop.permute.xlu0 %294
    %v297 = vmul.f32 %v291, %v295
    %299 = vrot.lane.b32.xlu0 %v297, 64
    %v300 = vpop.permute.xlu0 %299
    %v302 = vadd.f32 %v239, %v300
    %v303 = vtanh.pop %v302
    %v304 = vsub.f32 %v238, %v303
    %306 = vrot.lane.b32.xlu0 %v304, 96
    %v307 = vpop.permute.xlu0 %306
    %v309 = vmul.f32 %v291, %v307
    %311 = vrot.lane.b32.xlu0 %v309, 32
    %v312 = vpop.permute.xlu0 %311
    %v314 = vadd.f32 %v303, %v312
    %v315 = vld [vmem:[#allocation2 + $0x4] sm:$0x3]
    %v316 = vpack.c.bf16 %v314, %v314
    %318 = vrot.lane.b32.xlu0 %v316, 64
    %v319 = vpop.permute.xlu0 %318
    %v321 = vsel %vm159, %v319, 0
    %323 = vmatprep.subr.bf16.mxu0 0
    %324 = vmatpush1.bf16.msra.mxu0 %v52
    %325 = vmatprep.subr.bf16.mxu0 0
    %326 = vmatpush1.bf16.msra.mxu0 %v53
    %327 = vmatprep.subr.bf16.mxu0 0
    %328 = vmatpush1.bf16.msra.mxu0 0
    %329 = vmatprep.subr.bf16.mxu0 0
    %330 = vmatpush1.bf16.msra.mxu0 0
    %331 = vmatprep.subr.bf16.mxu0 0
    %332 = vmatpush1.bf16.msra.mxu0 0
    %333 = vmatprep.subr.bf16.mxu0 0
    %334 = vmatpush1.bf16.msra.mxu0 0
    %335 = vmatprep.subr.bf16.mxu0 0
    %336 = vmatpush1.bf16.msra.mxu0 0
    %337 = vmatprep.subr.bf16.mxu0 0
    %338 = vmatpush1.bf16.msra.mxu0 0
    %339 = vmatprep.subr.bf16.mxu0 0
    %340 = vmatpush1.bf16.msra.mxu0 0
    %341 = vmatprep.subr.bf16.mxu0 0
    %342 = vmatpush1.bf16.msra.mxu0 0
    %343 = vmatprep.subr.bf16.mxu0 0
    %344 = vmatpush1.bf16.msra.mxu0 0
    %345 = vmatprep.subr.bf16.mxu0 0
    %346 = vmatpush1.bf16.msra.mxu0 0
    %347 = vmatprep.subr.bf16.mxu0 0
    %348 = vmatpush1.bf16.msra.mxu0 0
    %349 = vmatprep.subr.bf16.mxu0 0
    %350 = vmatpush1.bf16.msra.mxu0 0
    %351 = vmatprep.subr.bf16.mxu0 0
    %352 = vmatpush1.bf16.msra.mxu0 0
    %353 = vmatprep.subr.bf16.mxu0 0
    %354 = vmatpush1.bf16.msra.mxu0 0
    %355 = vmatprep.mubr.bf16.mxu0 0
    %356 = vmatmul.mubr.bf16.gmra.mrb[0].mxu0 %v321
    %v357 = vpop.f32.mrb[0].mxu0
    %v358 = vadd.f32 0.0, %v357
    %v359 = vpop.f32.mrb[0].mxu0
    %v360 = vpop.f32.mrb[0].mxu0
    %v361 = vpop.f32.mrb[0].mxu0
    %362 = vdwg.mxu0
    %v363 = vadd.f32 %v315, %v358
    %v364 = vmul.f32 %v363, 0.5
    %v365 = vtanh.pop %v364
    %v366 = vmul.f32 %v365, 0.5
    %v367 = vadd.f32 %v366, 0.5
    %v368 = vadd.f32 %v358, %v210
    %370 = vrot.lane.b32.xlu0 %v368, 64
    %v371 = vpop.permute.xlu0 %370
    %v373 = vmul.f32 %v367, %v371
    %375 = vrot.lane.b32.xlu0 %v373, 64
    %v376 = vpop.permute.xlu0 %375
    %v378 = vadd.f32 %v315, %v376
    %v379 = vtanh.pop %v378
    %v380 = vsub.f32 %v314, %v379
    %382 = vrot.lane.b32.xlu0 %v380, 96
    %v383 = vpop.permute.xlu0 %382
    %v385 = vmul.f32 %v367, %v383
    %387 = vrot.lane.b32.xlu0 %v385, 32
    %v388 = vpop.permute.xlu0 %387
    %v390 = vadd.f32 %v379, %v388
    %v391 = vld [vmem:[#allocation2 + $0x6] sm:$0x3]
    %v392 = vpack.c.bf16 %v390, %v390
    %394 = vrot.lane.b32.xlu0 %v392, 64
    %v395 = vpop.permute.xlu0 %394
    %v397 = vsel %vm159, %v395, 0
    %399 = vmatprep.subr.bf16.mxu0 0
    %400 = vmatpush1.bf16.msra.mxu0 %v52
    %401 = vmatprep.subr.bf16.mxu0 0
    %402 = vmatpush1.bf16.msra.mxu0 %v53
    %403 = vmatprep.subr.bf16.mxu0 0
    %404 = vmatpush1.bf16.msra.mxu0 0
    %405 = vmatprep.subr.bf16.mxu0 0
    %406 = vmatpush1.bf16.msra.mxu0 0
    %407 = vmatprep.subr.bf16.mxu0 0
    %408 = vmatpush1.bf16.msra.mxu0 0
    %409 = vmatprep.subr.bf16.mxu0 0
    %410 = vmatpush1.bf16.msra.mxu0 0
    %411 = vmatprep.subr.bf16.mxu0 0
    %412 = vmatpush1.bf16.msra.mxu0 0
    %413 = vmatprep.subr.bf16.mxu0 0
    %414 = vmatpush1.bf16.msra.mxu0 0
    %415 = vmatprep.subr.bf16.mxu0 0
    %416 = vmatpush1.bf16.msra.mxu0 0
    %417 = vmatprep.subr.bf16.mxu0 0
    %418 = vmatpush1.bf16.msra.mxu0 0
    %419 = vmatprep.subr.bf16.mxu0 0
    %420 = vmatpush1.bf16.msra.mxu0 0
    %421 = vmatprep.subr.bf16.mxu0 0
    %422 = vmatpush1.bf16.msra.mxu0 0
    %423 = vmatprep.subr.bf16.mxu0 0
    %424 = vmatpush1.bf16.msra.mxu0 0
    %425 = vmatprep.subr.bf16.mxu0 0
    %426 = vmatpush1.bf16.msra.mxu0 0
    %427 = vmatprep.subr.bf16.mxu0 0
    %428 = vmatpush1.bf16.msra.mxu0 0
    %429 = vmatprep.subr.bf16.mxu0 0
    %430 = vmatpush1.bf16.msra.mxu0 0
    %431 = vmatprep.mubr.bf16.mxu0 0
    %432 = vmatmul.mubr.bf16.gmra.mrb[0].mxu0 %v397
    %v433 = vpop.f32.mrb[0].mxu0
    %v434 = vadd.f32 0.0, %v433
    %v435 = vpop.f32.mrb[0].mxu0
    %v436 = vpop.f32.mrb[0].mxu0
    %v437 = vpop.f32.mrb[0].mxu0
    %438 = vdwg.mxu0
    %v439 = vadd.f32 %v391, %v434
    %v440 = vmul.f32 %v439, 0.5
    %v441 = vtanh.pop %v440
    %v442 = vmul.f32 %v441, 0.5
    %v443 = vadd.f32 %v442, 0.5
    %v444 = vadd.f32 %v434, %v210
    %446 = vrot.lane.b32.xlu0 %v444, 64
    %v447 = vpop.permute.xlu0 %446
    %v449 = vmul.f32 %v443, %v447
    %451 = vrot.lane.b32.xlu0 %v449, 64
    %v452 = vpop.permute.xlu0 %451
    %v454 = vadd.f32 %v391, %v452
    %v455 = vtanh.pop %v454
    %v456 = vsub.f32 %v390, %v455
    %458 = vrot.lane.b32.xlu0 %v456, 96
    %v459 = vpop.permute.xlu0 %458
    %v461 = vmul.f32 %v443, %v459
    %463 = vrot.lane.b32.xlu0 %v461, 32
    %v464 = vpop.permute.xlu0 %463
    %v466 = vadd.f32 %v455, %v464
    %v467 = vld [vmem:[#allocation2 + $0x8] sm:$0x3]
    %v468 = vpack.c.bf16 %v466, %v466
    %470 = vrot.lane.b32.xlu0 %v468, 64
    %v471 = vpop.permute.xlu0 %470
    %v473 = vsel %vm159, %v471, 0
    %475 = vmatprep.subr.bf16.mxu0 0
    %476 = vmatpush1.bf16.msra.mxu0 %v52
    %477 = vmatprep.subr.bf16.mxu0 0
    %478 = vmatpush1.bf16.msra.mxu0 %v53
    %479 = vmatprep.subr.bf16.mxu0 0
    %480 = vmatpush1.bf16.msra.mxu0 0
    %481 = vmatprep.subr.bf16.mxu0 0
    %482 = vmatpush1.bf16.msra.mxu0 0
    %483 = vmatprep.subr.bf16.mxu0 0
    %484 = vmatpush1.bf16.msra.mxu0 0
    %485 = vmatprep.subr.bf16.mxu0 0
    %486 = vmatpush1.bf16.msra.mxu0 0
    %487 = vmatprep.subr.bf16.mxu0 0
    %488 = vmatpush1.bf16.msra.mxu0 0
    %489 = vmatprep.subr.bf16.mxu0 0
    %490 = vmatpush1.bf16.msra.mxu0 0
    %491 = vmatprep.subr.bf16.mxu0 0
    %492 = vmatpush1.bf16.msra.mxu0 0
    %493 = vmatprep.subr.bf16.mxu0 0
    %494 = vmatpush1.bf16.msra.mxu0 0
    %495 = vmatprep.subr.bf16.mxu0 0
    %496 = vmatpush1.bf16.msra.mxu0 0
    %497 = vmatprep.subr.bf16.mxu0 0
    %498 = vmatpush1.bf16.msra.mxu0 0
    %499 = vmatprep.subr.bf16.mxu0 0
    %500 = vmatpush1.bf16.msra.mxu0 0
    %501 = vmatprep.subr.bf16.mxu0 0
    %502 = vmatpush1.bf16.msra.mxu0 0
    %503 = vmatprep.subr.bf16.mxu0 0
    %504 = vmatpush1.bf16.msra.mxu0 0
    %505 = vmatprep.subr.bf16.mxu0 0
    %506 = vmatpush1.bf16.msra.mxu0 0
    %507 = vmatprep.mubr.bf16.mxu0 0
    %508 = vmatmul.mubr.bf16.gmra.mrb[0].mxu0 %v473
    %v509 = vpop.f32.mrb[0].mxu0
    %v510 = vadd.f32 0.0, %v509
    %v511 = vpop.f32.mrb[0].mxu0
    %v512 = vpop.f32.mrb[0].mxu0
    %v513 = vpop.f32.mrb[0].mxu0
    %514 = vdwg.mxu0
    %v515 = vadd.f32 %v467, %v510
    %v516 = vmul.f32 %v515, 0.5
    %v517 = vtanh.pop %v516
    %v518 = vmul.f32 %v517, 0.5
    %v519 = vadd.f32 %v518, 0.5
    %v520 = vadd.f32 %v510, %v210
    %522 = vrot.lane.b32.xlu0 %v520, 64
    %v523 = vpop.permute.xlu0 %522
    %v525 = vmul.f32 %v519, %v523
    %527 = vrot.lane.b32.xlu0 %v525, 64
    %v528 = vpop.permute.xlu0 %527
    %v530 = vadd.f32 %v467, %v528
    %v531 = vtanh.pop %v530
    %v532 = vsub.f32 %v466, %v531
    %534 = vrot.lane.b32.xlu0 %v532, 96
    %v535 = vpop.permute.xlu0 %534
    %v537 = vmul.f32 %v519, %v535
    %539 = vrot.lane.b32.xlu0 %v537, 32
    %v540 = vpop.permute.xlu0 %539
    %v542 = vadd.f32 %v531, %v540
    %v543 = vld [vmem:[#allocation2 + $0xa] sm:$0x3]
    %v544 = vpack.c.bf16 %v542, %v542
    %546 = vrot.lane.b32.xlu0 %v544, 64
    %v547 = vpop.permute.xlu0 %546
    %v549 = vsel %vm159, %v547, 0
    %551 = vmatprep.subr.bf16.mxu0 0
    %552 = vmatpush1.bf16.msra.mxu0 %v52
    %553 = vmatprep.subr.bf16.mxu0 0
    %554 = vmatpush1.bf16.msra.mxu0 %v53
    %555 = vmatprep.subr.bf16.mxu0 0
    %556 = vmatpush1.bf16.msra.mxu0 0
    %557 = vmatprep.subr.bf16.mxu0 0
    %558 = vmatpush1.bf16.msra.mxu0 0
    %559 = vmatprep.subr.bf16.mxu0 0
    %560 = vmatpush1.bf16.msra.mxu0 0
    %561 = vmatprep.subr.bf16.mxu0 0
    %562 = vmatpush1.bf16.msra.mxu0 0
    %563 = vmatprep.subr.bf16.mxu0 0
    %564 = vmatpush1.bf16.msra.mxu0 0
    %565 = vmatprep.subr.bf16.mxu0 0
    %566 = vmatpush1.bf16.msra.mxu0 0
    %567 = vmatprep.subr.bf16.mxu0 0
    %568 = vmatpush1.bf16.msra.mxu0 0
    %569 = vmatprep.subr.bf16.mxu0 0
    %570 = vmatpush1.bf16.msra.mxu0 0
    %571 = vmatprep.subr.bf16.mxu0 0
    %572 = vmatpush1.bf16.msra.mxu0 0
    %573 = vmatprep.subr.bf16.mxu0 0
    %574 = vmatpush1.bf16.msra.mxu0 0
    %575 = vmatprep.subr.bf16.mxu0 0
    %576 = vmatpush1.bf16.msra.mxu0 0
    %577 = vmatprep.subr.bf16.mxu0 0
    %578 = vmatpush1.bf16.msra.mxu0 0
    %579 = vmatprep.subr.bf16.mxu0 0
    %580 = vmatpush1.bf16.msra.mxu0 0
    %581 = vmatprep.subr.bf16.mxu0 0
    %582 = vmatpush1.bf16.msra.mxu0 0
    %583 = vmatprep.mubr.bf16.mxu0 0
    %584 = vmatmul.mubr.bf16.gmra.mrb[0].mxu0 %v549
    %v585 = vpop.f32.mrb[0].mxu0
    %v586 = vadd.f32 0.0, %v585
    %v587 = vpop.f32.mrb[0].mxu0
    %v588 = vpop.f32.mrb[0].mxu0
    %v589 = vpop.f32.mrb[0].mxu0
    %590 = vdwg.mxu0
    %v591 = vadd.f32 %v543, %v586
    %v592 = vmul.f32 %v591, 0.5
    %v593 = vtanh.pop %v592
    %v594 = vmul.f32 %v593, 0.5
    %v595 = vadd.f32 %v594, 0.5
    %v596 = vadd.f32 %v586, %v210
    %598 = vrot.lane.b32.xlu0 %v596, 64
    %v599 = vpop.permute.xlu0 %598
    %v601 = vmul.f32 %v595, %v599
    %603 = vrot.lane.b32.xlu0 %v601, 64
    %v604 = vpop.permute.xlu0 %603
    %v606 = vadd.f32 %v543, %v604
    %v607 = vtanh.pop %v606
    %v608 = vsub.f32 %v542, %v607
    %610 = vrot.lane.b32.xlu0 %v608, 96
    %v611 = vpop.permute.xlu0 %610
    %v613 = vmul.f32 %v595, %v611
    %615 = vrot.lane.b32.xlu0 %v613, 32
    %v616 = vpop.permute.xlu0 %615
    %v618 = vadd.f32 %v607, %v616
    %v619 = vld [vmem:[#allocation2 + $0xc] sm:$0x3]
    %v620 = vpack.c.bf16 %v618, %v618
    %622 = vrot.lane.b32.xlu0 %v620, 64
    %v623 = vpop.permute.xlu0 %622
    %v625 = vsel %vm159, %v623, 0
    %627 = vmatprep.subr.bf16.mxu0 0
    %628 = vmatpush1.bf16.msra.mxu0 %v52
    %629 = vmatprep.subr.bf16.mxu0 0
    %630 = vmatpush1.bf16.msra.mxu0 %v53
    %631 = vmatprep.subr.bf16.mxu0 0
    %632 = vmatpush1.bf16.msra.mxu0 0
    %633 = vmatprep.subr.bf16.mxu0 0
    %634 = vmatpush1.bf16.msra.mxu0 0
    %635 = vmatprep.subr.bf16.mxu0 0
    %636 = vmatpush1.bf16.msra.mxu0 0
    %637 = vmatprep.subr.bf16.mxu0 0
    %638 = vmatpush1.bf16.msra.mxu0 0
    %639 = vmatprep.subr.bf16.mxu0 0
    %640 = vmatpush1.bf16.msra.mxu0 0
    %641 = vmatprep.subr.bf16.mxu0 0
    %642 = vmatpush1.bf16.msra.mxu0 0
    %643 = vmatprep.subr.bf16.mxu0 0
    %644 = vmatpush1.bf16.msra.mxu0 0
    %645 = vmatprep.subr.bf16.mxu0 0
    %646 = vmatpush1.bf16.msra.mxu0 0
    %647 = vmatprep.subr.bf16.mxu0 0
    %648 = vmatpush1.bf16.msra.mxu0 0
    %649 = vmatprep.subr.bf16.mxu0 0
    %650 = vmatpush1.bf16.msra.mxu0 0
    %651 = vmatprep.subr.bf16.mxu0 0
    %652 = vmatpush1.bf16.msra.mxu0 0
    %653 = vmatprep.subr.bf16.mxu0 0
    %654 = vmatpush1.bf16.msra.mxu0 0
    %655 = vmatprep.subr.bf16.mxu0 0
    %656 = vmatpush1.bf16.msra.mxu0 0
    %657 = vmatprep.subr.bf16.mxu0 0
    %658 = vmatpush1.bf16.msra.mxu0 0
    %659 = vmatprep.mubr.bf16.mxu0 0
    %660 = vmatmul.mubr.bf16.gmra.mrb[0].mxu0 %v625
    %v661 = vpop.f32.mrb[0].mxu0
    %v662 = vadd.f32 0.0, %v661
    %v663 = vpop.f32.mrb[0].mxu0
    %v664 = vpop.f32.mrb[0].mxu0
    %v665 = vpop.f32.mrb[0].mxu0
    %666 = vdwg.mxu0
    %v667 = vadd.f32 %v619, %v662
    %v668 = vmul.f32 %v667, 0.5
    %v669 = vtanh.pop %v668
    %v670 = vmul.f32 %v669, 0.5
    %v671 = vadd.f32 %v670, 0.5
    %v672 = vadd.f32 %v662, %v210
    %674 = vrot.lane.b32.xlu0 %v672, 64
    %v675 = vpop.permute.xlu0 %674
    %v677 = vmul.f32 %v671, %v675
    %679 = vrot.lane.b32.xlu0 %v677, 64
    %v680 = vpop.permute.xlu0 %679
    %v682 = vadd.f32 %v619, %v680
    %v683 = vtanh.pop %v682
    %v684 = vsub.f32 %v618, %v683
    %686 = vrot.lane.b32.xlu0 %v684, 96
    %v687 = vpop.permute.xlu0 %686
    %v689 = vmul.f32 %v671, %v687
    %691 = vrot.lane.b32.xlu0 %v689, 32
    %v692 = vpop.permute.xlu0 %691
    %v694 = vadd.f32 %v683, %v692
    %v695 = vld [vmem:[#allocation2 + $0xe] sm:$0x3]
    %v696 = vpack.c.bf16 %v694, %v694
    %698 = vrot.lane.b32.xlu0 %v696, 64
    %v699 = vpop.permute.xlu0 %698
    %v701 = vsel %vm159, %v699, 0
    %703 = vmatprep.subr.bf16.mxu0 0
    %704 = vmatpush1.bf16.msra.mxu0 %v52
    %705 = vmatprep.subr.bf16.mxu0 0
    %706 = vmatpush1.bf16.msra.mxu0 %v53
    %707 = vmatprep.subr.bf16.mxu0 0
    %708 = vmatpush1.bf16.msra.mxu0 0
    %709 = vmatprep.subr.bf16.mxu0 0
    %710 = vmatpush1.bf16.msra.mxu0 0
    %711 = vmatprep.subr.bf16.mxu0 0
    %712 = vmatpush1.bf16.msra.mxu0 0
    %713 = vmatprep.subr.bf16.mxu0 0
    %714 = vmatpush1.bf16.msra.mxu0 0
    %715 = vmatprep.subr.bf16.mxu0 0
    %716 = vmatpush1.bf16.msra.mxu0 0
    %717 = vmatprep.subr.bf16.mxu0 0
    %718 = vmatpush1.bf16.msra.mxu0 0
    %719 = vmatprep.subr.bf16.mxu0 0
    %720 = vmatpush1.bf16.msra.mxu0 0
    %721 = vmatprep.subr.bf16.mxu0 0
    %722 = vmatpush1.bf16.msra.mxu0 0
    %723 = vmatprep.subr.bf16.mxu0 0
    %724 = vmatpush1.bf16.msra.mxu0 0
    %725 = vmatprep.subr.bf16.mxu0 0
    %726 = vmatpush1.bf16.msra.mxu0 0
    %727 = vmatprep.subr.bf16.mxu0 0
    %728 = vmatpush1.bf16.msra.mxu0 0
    %729 = vmatprep.subr.bf16.mxu0 0
    %730 = vmatpush1.bf16.msra.mxu0 0
    %731 = vmatprep.subr.bf16.mxu0 0
    %732 = vmatpush1.bf16.msra.mxu0 0
    %733 = vmatprep.subr.bf16.mxu0 0
    %734 = vmatpush1.bf16.msra.mxu0 0
    %735 = vmatprep.mubr.bf16.mxu0 0
    %736 = vmatmul.mubr.bf16.gmra.mrb[0].mxu0 %v701
    %v737 = vpop.f32.mrb[0].mxu0
    %v738 = vadd.f32 0.0, %v737
    %v739 = vpop.f32.mrb[0].mxu0
    %v740 = vpop.f32.mrb[0].mxu0
    %v741 = vpop.f32.mrb[0].mxu0
    %742 = vdwg.mxu0
    %v743 = vadd.f32 %v695, %v738
    %v744 = vmul.f32 %v743, 0.5
    %v745 = vtanh.pop %v744
    %v746 = vmul.f32 %v745, 0.5
    %v747 = vadd.f32 %v746, 0.5
    %v748 = vadd.f32 %v738, %v210
    %750 = vrot.lane.b32.xlu0 %v748, 64
    %v751 = vpop.permute.xlu0 %750
    %v753 = vmul.f32 %v747, %v751
    %755 = vrot.lane.b32.xlu0 %v753, 64
    %v756 = vpop.permute.xlu0 %755
    %v758 = vadd.f32 %v695, %v756
    %v759 = vtanh.pop %v758
    %v760 = vsub.f32 %v694, %v759
    %762 = vrot.lane.b32.xlu0 %v760, 96
    %v763 = vpop.permute.xlu0 %762
    %v765 = vmul.f32 %v747, %v763
    %767 = vrot.lane.b32.xlu0 %v765, 32
    %v768 = vpop.permute.xlu0 %767
    %v770 = vadd.f32 %v759, %v768
    %772 = vrot.lane.b32.xlu0 %v770, 64
    %v773 = vpop.permute.xlu0 %772
    %vm775 = vcmask 254976
    %776 = vst.msk [vmem:[#allocation8] sm:$0x3] %vm775, %v773
    %v777 = vlaneseq
    %v778 = vshrl.u32 %v777, 7
    %v779 = vsub.s32 0, %v778
    %v780 = vrot.slane %v60, %v779
    %782 = vrot.lane.b32.xlu0 %v238, 64
    %v783 = vpop.permute.xlu0 %782
    %v784 = vsel %vm159, %v783, 0
    %786 = vmatprep.subr.mxu0 0.0
    %787 = vmatpush1.msra.mxu0 %v56
    %788 = vmatprep.subr.mxu0 0.0
    %789 = vmatpush1.msra.mxu0 %v57
    %790 = vmatprep.subr.mxu0 0.0
    %791 = vmatpush1.msra.mxu0 %v58
    %792 = vmatprep.subr.mxu0 0.0
    %793 = vmatpush1.msra.mxu0 %v59
    %794 = vmatprep.subr.mxu0 0.0
    %795 = vmatpush1.msra.mxu0 0.0
    %796 = vmatprep.subr.mxu0 0.0
    %797 = vmatpush1.msra.mxu0 0.0
    %798 = vmatprep.subr.mxu0 0.0
    %799 = vmatpush1.msra.mxu0 0.0
    %800 = vmatprep.subr.mxu0 0.0
    %801 = vmatpush1.msra.mxu0 0.0
    %802 = vmatprep.subr.mxu0 0.0
    %803 = vmatpush1.msra.mxu0 0.0
    %804 = vmatprep.subr.mxu0 0.0
    %805 = vmatpush1.msra.mxu0 0.0
    %806 = vmatprep.subr.mxu0 0.0
    %807 = vmatpush1.msra.mxu0 0.0
    %808 = vmatprep.subr.mxu0 0.0
    %809 = vmatpush1.msra.mxu0 0.0
    %810 = vmatprep.subr.mxu0 0.0
    %811 = vmatpush1.msra.mxu0 0.0
    %812 = vmatprep.subr.mxu0 0.0
    %813 = vmatpush1.msra.mxu0 0.0
    %814 = vmatprep.subr.mxu0 0.0
    %815 = vmatpush1.msra.mxu0 0.0
    %816 = vmatprep.subr.mxu0 0.0
    %817 = vmatpush1.msra.mxu0 0.0
    %818 = vmatprep.subr.mxu0 0.0
    %819 = vmatpush1.msra.mxu0 0.0
    %820 = vmatprep.subr.mxu0 0.0
    %821 = vmatpush1.msra.mxu0 0.0
    %822 = vmatprep.subr.mxu0 0.0
    %823 = vmatpush1.msra.mxu0 0.0
    %824 = vmatprep.subr.mxu0 0.0
    %825 = vmatpush1.msra.mxu0 0.0
    %826 = vmatprep.subr.mxu0 0.0
    %827 = vmatpush1.msra.mxu0 0.0
    %828 = vmatprep.subr.mxu0 0.0
    %829 = vmatpush1.msra.mxu0 0.0
    %830 = vmatprep.subr.mxu0 0.0
    %831 = vmatpush1.msra.mxu0 0.0
    %832 = vmatprep.subr.mxu0 0.0
    %833 = vmatpush1.msra.mxu0 0.0
    %834 = vmatprep.subr.mxu0 0.0
    %835 = vmatpush1.msra.mxu0 0.0
    %836 = vmatprep.subr.mxu0 0.0
    %837 = vmatpush1.msra.mxu0 0.0
    %838 = vmatprep.subr.mxu0 0.0
    %839 = vmatpush1.msra.mxu0 0.0
    %840 = vmatprep.subr.mxu0 0.0
    %841 = vmatpush1.msra.mxu0 0.0
    %842 = vmatprep.subr.mxu0 0.0
    %843 = vmatpush1.msra.mxu0 0.0
    %844 = vmatprep.subr.mxu0 0.0
    %845 = vmatpush1.msra.mxu0 0.0
    %846 = vmatprep.subr.mxu0 0.0
    %847 = vmatpush1.msra.mxu0 0.0
    %848 = vmatprep.subr.mxu0 0.0
    %849 = vmatpush1.msra.mxu0 0.0
    %850 = vmatprep.mubr.f32.mxu0 0.0
    %851 = vmatmul.mubr.f32.gmra.mrb[0].mxu0 %v784
    %v852 = vpop.f32.mrb[0].mxu0
    %v853 = vadd.f32 %v780, %v852
    %v854 = vpop.f32.mrb[0].mxu0
    %855 = vdwg.mxu0
    %vm856 = vcmask 25600
    %857 = vst.msk [vmem:[#allocation9] sm:$0x3] %vm856, %v853
    // Predicated region
    $region22: #{model_controller_forward.1} parent=1 // pred_check
      _
    $region23: #{model_controller_forward.1} parent=1 // pred_check_branch
      %859 = sbr.rel (0) target = $region25
    $region24: #{model_controller_forward.1} parent=1 // pred_region
      %s861 = ssub.s32 32, 32
      %862 = vsyncadd [#allocation5], %s861
      %s864 = sshll.u32 [#allocation8], 4
      %s865 = int_to_ptr.vmem [resolvable:$true] %s864
      %867 = dma.vmem_to_hbm [thread:$0]  %s865, 32, %s3, [#allocation5]
    $region25: #{model_controller_forward.1} parent=1 // pred_fallthru
      _
    // Predicated region
    $region26: #{model_controller_forward.1} parent=1 // pred_check
      _
    $region27: #{model_controller_forward.1} parent=1 // pred_check_branch
      %869 = sbr.rel (0) target = $region29
    $region28: #{model_controller_forward.1} parent=1 // pred_region
      %s871 = ssub.s32 32, 32
      %872 = vsyncadd [#allocation10], %s871
      %s874 = sshll.u32 [#allocation9], 4
      %s875 = int_to_ptr.vmem [resolvable:$true] %s874
      %877 = dma.vmem_to_hbm [thread:$0]  %s875, 32, %s4, [#allocation10]
    $region29: #{model_controller_forward.1} parent=1 // pred_fallthru
      _
    // Predicated region
    $region30: #{model_controller_forward.1} parent=1 // pred_check
      _
    $region31: #{model_controller_forward.1} parent=1 // pred_check_branch
      %879 = sbr.rel (0) target = $region33
    $region32: #{model_controller_forward.1} parent=1 // pred_region
      %880 = dma.done [#allocation5], 32
    $region33: #{model_controller_forward.1} parent=1 // pred_fallthru
      _
    // Predicated region
    $region34: #{model_controller_forward.1} parent=1 // pred_check
      _
    $region35: #{model_controller_forward.1} parent=1 // pred_check_branch
      %882 = sbr.rel (0) target = $region37
    $region36: #{model_controller_forward.1} parent=1 // pred_region
      %883 = dma.done [#allocation10], 32
    $region37: #{model_controller_forward.1} parent=1 // pred_fallthru
      _
    %884 = vsyncpa [#allocation4], 1
    %885 = vsyncpa [#allocation7], 1
    %886 = vsyncpa [#allocation5], 1
    %887 = vsyncpa [#allocation10], 1

</llo_original>
